<compile_context>
chip_gen: v6e
topology: v6e:2x2x1
jax: 0.10.0
libtpu: 0.0.40
codegen_flags: <defaults>
</compile_context>

<pallas_src>
import functools

import jax
import jax.numpy as jnp
from jax.experimental import pallas as pl
from jax.experimental.pallas import tpu as pltpu

EPS = 1e-12  # matches F.normalize default eps

# Conservative, generation-safe VMEM budgets.
_VMEM_LIMIT_BYTES = 48 * 1024 * 1024        # scoped limit we request
_INPUT_VMEM_BUDGET = 36 * 1024 * 1024       # for 2 inputs x 2 pipeline buffers


def _at_loss_kernel(s_ref, t_ref, o_ref):
    """One grid step: TB samples. Writes this tile's partial sum of squared
    attention-map differences into a lane-dense (1, 128) output row."""
    s = s_ref[...].astype(jnp.float32)      # (TB, C, HW)
    t = t_ref[...].astype(jnp.float32)      # (TB, C, HW)

    # Attention maps: sum of squares over channels -> (TB, HW)
    a_s = jnp.sum(s * s, axis=1)
    a_t = jnp.sum(t * t, axis=1)

    # L2-normalize each flattened map: a / max(||a||, eps)
    # == a * rsqrt(max(||a||^2, eps^2))  (sqrt is monotone, eps > 0)
    ss = jnp.sum(a_s * a_s, axis=-1, keepdims=True)      # (TB, 1)
    tt = jnp.sum(a_t * a_t, axis=-1, keepdims=True)      # (TB, 1)
    a_s = a_s * jax.lax.rsqrt(jnp.maximum(ss, EPS * EPS))
    a_t = a_t * jax.lax.rsqrt(jnp.maximum(tt, EPS * EPS))

    d = a_s - a_t
    partial = jnp.sum(d * d)                              # scalar f32

    # Lane-dense (1, 128) store (unmasked vst); wrapper reads column 0.
    o_ref[...] = jnp.broadcast_to(partial, o_ref.shape).astype(jnp.float32)


def _choose_tb(n, c, hw, itemsize, budget=_INPUT_VMEM_BUDGET):
    """Largest per-step batch TB such that 2 inputs x 2 pipeline buffers of
    (TB, C_pad, HW) fit the VMEM budget (C padded to sublane multiple of 8)."""
    c_pad = -(-c // 8) * 8
    per_sample = c_pad * hw * itemsize
    tb = max(1, budget // (4 * per_sample))
    return int(min(tb, n))


@functools.partial(jax.jit, static_argnames=("loss_weight",))
def base_distill_loss(student_x, teacher_x, loss_weight=1.0):
    """student_x, teacher_x: (N, C, H, W), same shape/dtype. Returns f32 scalar."""
    assert student_x.shape == teacher_x.shape
    N, C, H, W = student_x.shape
    HW = H * W
    s = student_x.reshape(N, C, HW)
    t = teacher_x.reshape(N, C, HW)

    itemsize = jnp.dtype(student_x.dtype).itemsize
    tb = _choose_tb(N, C, HW, itemsize)
    num_tiles = -(-N // tb)
    n_pad = num_tiles * tb
    if n_pad != N:
        # Zero-padded samples have a == 0 for both student and teacher, so they
        # contribute exactly 0 to the partial sums (safe).
        pad = ((0, n_pad - N), (0, 0), (0, 0))
        s = jnp.pad(s, pad)
        t = jnp.pad(t, pad)

    cost = pl.CostEstimate(
        flops=6 * n_pad * C * HW,
        transcendentals=2 * n_pad,
        bytes_accessed=2 * n_pad * C * HW * itemsize + num_tiles * 128 * 4,
    )

    partials = pl.pallas_call(
        _at_loss_kernel,
        out_shape=jax.ShapeDtypeStruct((num_tiles, 128), jnp.float32),
        grid_spec=pltpu.PrefetchScalarGridSpec(
            num_scalar_prefetch=0,
            grid=(num_tiles,),
            in_specs=[
                pl.BlockSpec((tb, C, HW), lambda i: (i, 0, 0)),
                pl.BlockSpec((tb, C, HW), lambda i: (i, 0, 0)),
            ],
            out_specs=pl.BlockSpec((1, 128), lambda i: (i, 0)),
        ),
        compiler_params=pltpu.CompilerParams(
            dimension_semantics=("parallel",),   # v7x: shard batch across 2 TCs
            vmem_limit_bytes=_VMEM_LIMIT_BYTES,
        ),
        cost_estimate=cost,
    )(s, t)

    total = jnp.sum(partials[:, 0])
    # mean over (N, H*W) elements (original N, not padded), then loss_weight
    return total * jnp.float32(loss_weight / (N * HW))


def _reference(student_x, teacher_x, loss_weight=1.0):
    """Pure-JAX reference of the attention-transfer loss."""
    N = student_x.shape[0]

    def at(x):
        a = jnp.sum(x.astype(jnp.float32) ** 2, axis=1).reshape(N, -1)
        nrm = jnp.maximum(jnp.sqrt(jnp.sum(a * a, axis=1, keepdims=True)), EPS)
        return a / nrm

    return loss_weight * jnp.mean((at(student_x) - at(teacher_x)) ** 2)


if __name__ == "__main__":
    key = jax.random.PRNGKey(0)
    k1, k2 = jax.random.split(key)
    N, C, H, W = 2, 4, 16, 16
    student = jax.random.normal(k1, (N, C, H, W), dtype=jnp.float32)
    teacher = jax.random.normal(k2, (N, C, H, W), dtype=jnp.float32)

    loss = jax.block_until_ready(base_distill_loss(student, teacher, loss_weight=1.0))
    ref = jax.block_until_ready(_reference(student, teacher, loss_weight=1.0))

    assert jnp.allclose(loss, ref, rtol=1e-5, atol=1e-6), (loss, ref)
    print("KERNEL_OK")
</pallas_src>

<mosaic_0001>
module attributes {stable_mosaic.version = 11 : i64} {
  func.func @_at_loss_kernel(%arg0: i32, %arg1: memref<2x4x256xf32, #tpu.memory_space<vmem>>, %arg2: memref<2x4x256xf32, #tpu.memory_space<vmem>>, %arg3: memref<1x128xf32, #tpu.memory_space<vmem>>) attributes {dimension_semantics = [#tpu.dimension_semantics<parallel>], iteration_bounds = array<i64: 1>, scalar_prefetch = 0 : i64, scratch_operands = 0 : i64, tpu.core_type = #tpu.core_type<tc>, window_params = [{transform_indices = @transform_0, window_bounds = array<i64: 2, 4, 256>}, {transform_indices = @transform_1, window_bounds = array<i64: 2, 4, 256>}, {transform_indices = @transform_2, window_bounds = array<i64: 1, 128>}]} {
    %c0 = arith.constant 0 : index
    %c0_0 = arith.constant 0 : index
    %c0_1 = arith.constant 0 : index
    %0 = vector.load %arg1[%c0, %c0_0, %c0_1] : memref<2x4x256xf32, #tpu.memory_space<vmem>>, vector<2x4x256xf32>
    %c0_2 = arith.constant 0 : index
    %c0_3 = arith.constant 0 : index
    %c0_4 = arith.constant 0 : index
    %1 = vector.load %arg2[%c0_2, %c0_3, %c0_4] : memref<2x4x256xf32, #tpu.memory_space<vmem>>, vector<2x4x256xf32>
    %2 = arith.mulf %0, %0 : vector<2x4x256xf32>
    %cst = arith.constant dense<0.000000e+00> : vector<2x256xf32>
    %3 = vector.multi_reduction <add>, %2, %cst [1] : vector<2x4x256xf32> to vector<2x256xf32>
    %4 = arith.mulf %1, %1 : vector<2x4x256xf32>
    %cst_5 = arith.constant dense<0.000000e+00> : vector<2x256xf32>
    %5 = vector.multi_reduction <add>, %4, %cst_5 [1] : vector<2x4x256xf32> to vector<2x256xf32>
    %6 = arith.mulf %3, %3 : vector<2x256xf32>
    %cst_6 = arith.constant dense<0.000000e+00> : vector<2xf32>
    %7 = vector.multi_reduction <add>, %6, %cst_6 [1] : vector<2x256xf32> to vector<2xf32>
    %8 = vector.shape_cast %7 : vector<2xf32> to vector<2x1xf32>
    %9 = arith.mulf %5, %5 : vector<2x256xf32>
    %cst_7 = arith.constant dense<0.000000e+00> : vector<2xf32>
    %10 = vector.multi_reduction <add>, %9, %cst_7 [1] : vector<2x256xf32> to vector<2xf32>
    %11 = vector.shape_cast %10 : vector<2xf32> to vector<2x1xf32>
    %cst_8 = arith.constant 1.000000e-24 : f32
    %12 = vector.broadcast %cst_8 : f32 to vector<2x1xf32>
    %13 = arith.maximumf %8, %12 : vector<2x1xf32>
    %14 = math.rsqrt %13 : vector<2x1xf32>
    %15 = vector.broadcast %14 : vector<2x1xf32> to vector<2x256xf32>
    %16 = arith.mulf %3, %15 : vector<2x256xf32>
    %cst_9 = arith.constant 1.000000e-24 : f32
    %17 = vector.broadcast %cst_9 : f32 to vector<2x1xf32>
    %18 = arith.maximumf %11, %17 : vector<2x1xf32>
    %19 = math.rsqrt %18 : vector<2x1xf32>
    %20 = vector.broadcast %19 : vector<2x1xf32> to vector<2x256xf32>
    %21 = arith.mulf %5, %20 : vector<2x256xf32>
    %22 = arith.subf %16, %21 : vector<2x256xf32>
    %23 = arith.mulf %22, %22 : vector<2x256xf32>
    %24 = vector.shape_cast %23 : vector<2x256xf32> to vector<1x2x256xf32>
    %cst_10 = arith.constant dense<0.000000e+00> : vector<1xf32>
    %25 = vector.multi_reduction <add>, %24, %cst_10 [1, 2] : vector<1x2x256xf32> to vector<1xf32>
    %26 = vector.shape_cast %25 : vector<1xf32> to vector<1x1x1xf32>
    %27 = vector.extract %26[0, 0, 0] : f32 from vector<1x1x1xf32>
    %28 = vector.broadcast %27 : f32 to vector<1x128xf32>
    %c0_11 = arith.constant 0 : index
    %c0_12 = arith.constant 0 : index
    %29 = vector.load %arg3[%c0_11, %c0_12] : memref<1x128xf32, #tpu.memory_space<vmem>>, vector<1x128xf32>
    tpu.vector_store %arg3[%c0_11, %c0_12], %28 {strides = array<i32>} : memref<1x128xf32, #tpu.memory_space<vmem>>, vector<1x128xf32>,
    return
  }
  func.func @transform_0(%arg0: i32) -> (i32, i32, i32) {
    %c0_i32 = arith.constant 0 : i32
    %c0_i32_0 = arith.constant 0 : i32
    %c0_i32_1 = arith.constant 0 : i32
    return %arg0, %c0_i32, %c0_i32_0 : i32, i32, i32
  }
  func.func @transform_1(%arg0: i32) -> (i32, i32, i32) {
    %c0_i32 = arith.constant 0 : i32
    %c0_i32_0 = arith.constant 0 : i32
    %c0_i32_1 = arith.constant 0 : i32
    return %arg0, %c0_i32, %c0_i32_0 : i32, i32, i32
  }
  func.func @transform_2(%arg0: i32) -> (i32, i32) {
    %c0_i32 = arith.constant 0 : i32
    %c0_i32_0 = arith.constant 0 : i32
    return %arg0, %c0_i32 : i32, i32
  }
}

</mosaic_0001>

<llo_original>
// kernel: base_distill_loss.1
$region0: #{base_distill_loss.1}
  #allocation0 [shape = 'u32[]', space=smem, size = 0x4, offset = 0x4, fixed_abs, tag = 'smem constant byte address 0x4 - core index']
  #allocation1 [shape = 'u32[144,128]{1,0:T(1,128)}', space=vmem, size = 0x12000, scoped, tag = 'internal scratch']
  %s0 = inlined_call_operand.vmem [shape: f32[2,4,256], index: 0, kind: input, shape index: {}]
  %s1 = inlined_call_operand.vmem [shape: f32[2,4,256], index: 1, kind: input, shape index: {}]
  %s2 = inlined_call_operand.vmem [shape: f32[1,128], index: 2, kind: output, shape index: {}]
  %s3 = sld [smem:[#allocation0]]
  $region18: #{base_distill_loss.1} parent=0
    _
  %s5 = ssub.s32 1, %s3
  %s6 = scalar_select 0, %s5, %s3
  // Predicated region
  $region2: #{base_distill_loss.1} parent=0 // pred_check
    _
  $region3: #{base_distill_loss.1} parent=0 // pred_check_branch
    %8 = sbr.rel (0) target = $region5
  $region4: #{base_distill_loss.1} parent=0 // pred_region
    _
  $region5: #{base_distill_loss.1} parent=0 // pred_fallthru
    _
  // Predicated region
  $region6: #{base_distill_loss.1} parent=0 // pred_check
    _
  $region7: #{base_distill_loss.1} parent=0 // pred_check_branch
    %10 = sbr.rel (0) target = $region9
  $region8: #{base_distill_loss.1} parent=0 // pred_region
    _
  $region9: #{base_distill_loss.1} parent=0 // pred_fallthru
    _
  %v11 = vld [vmem:[%s0] sm:$0xff]
  %v12 = vld [vmem:[%s0 + $0x8] sm:$0xff]
  %v13 = vld [vmem:[%s1] sm:$0xff]
  %v14 = vld [vmem:[%s1 + $0x8] sm:$0xff]
  %v15 = vmul.f32 %v11, %v11
  %v16 = vmul.f32 %v12, %v12
  %v19 = vcombine.high %v15, %v15
  %v20 = vcombine.high %v16, %v16
  %vm23 = vcmask 1043456
  %v24 = vsel %vm23, %v15, 0.0
  %v25 = vrot.slane %v24, 4
  %v26 = vadd.f32 %v24, %v25
  %v27 = vrot.slane %v26, 2
  %v28 = vadd.f32 %v26, %v27
  %v29 = vrot.slane %v28, 1
  %v30 = vadd.f32 %v28, %v29
  %v31 = vsel %vm23, %v19, 0.0
  %v32 = vrot.slane %v31, 4
  %v33 = vadd.f32 %v31, %v32
  %v34 = vrot.slane %v33, 2
  %v35 = vadd.f32 %v33, %v34
  %v36 = vrot.slane %v35, 1
  %v37 = vadd.f32 %v35, %v36
  %v38 = vsel %vm23, %v16, 0.0
  %v39 = vrot.slane %v38, 4
  %v40 = vadd.f32 %v38, %v39
  %v41 = vrot.slane %v40, 2
  %v42 = vadd.f32 %v40, %v41
  %v43 = vrot.slane %v42, 1
  %v44 = vadd.f32 %v42, %v43
  %v45 = vsel %vm23, %v20, 0.0
  %v46 = vrot.slane %v45, 4
  %v47 = vadd.f32 %v45, %v46
  %v48 = vrot.slane %v47, 2
  %v49 = vadd.f32 %v47, %v48
  %v50 = vrot.slane %v49, 1
  %v51 = vadd.f32 %v49, %v50
  %v52 = vmul.f32 %v13, %v13
  %v53 = vmul.f32 %v14, %v14
  %v56 = vcombine.high %v52, %v52
  %v57 = vcombine.high %v53, %v53
  %v60 = vsel %vm23, %v52, 0.0
  %v61 = vrot.slane %v60, 4
  %v62 = vadd.f32 %v60, %v61
  %v63 = vrot.slane %v62, 2
  %v64 = vadd.f32 %v62, %v63
  %v65 = vrot.slane %v64, 1
  %v66 = vadd.f32 %v64, %v65
  %v67 = vsel %vm23, %v56, 0.0
  %v68 = vrot.slane %v67, 4
  %v69 = vadd.f32 %v67, %v68
  %v70 = vrot.slane %v69, 2
  %v71 = vadd.f32 %v69, %v70
  %v72 = vrot.slane %v71, 1
  %v73 = vadd.f32 %v71, %v72
  %v74 = vsel %vm23, %v53, 0.0
  %v75 = vrot.slane %v74, 4
  %v76 = vadd.f32 %v74, %v75
  %v77 = vrot.slane %v76, 2
  %v78 = vadd.f32 %v76, %v77
  %v79 = vrot.slane %v78, 1
  %v80 = vadd.f32 %v78, %v79
  %v81 = vsel %vm23, %v57, 0.0
  %v82 = vrot.slane %v81, 4
  %v83 = vadd.f32 %v81, %v82
  %v84 = vrot.slane %v83, 2
  %v85 = vadd.f32 %v83, %v84
  %v86 = vrot.slane %v85, 1
  %v87 = vadd.f32 %v85, %v86
  %v88 = vmul.f32 %v30, %v30
  %v89 = vmul.f32 %v37, %v37
  %v90 = vmul.f32 %v44, %v44
  %v91 = vmul.f32 %v51, %v51
  %vm96 = vcmask 1041409
  %v97 = vsel %vm96, %v90, %v88
  %v98 = vsel %vm96, %v91, %v89
  %vm101 = vcmask 1041408
  %v102 = vsel %vm101, %v97, 0.0
  %v103 = vsel %vm101, %v98, 0.0
  %v104 = vadd.f32 %v102, %v103
  %105 = vadd.xlane.f32.xlu0 %v104
  %v106 = vpop.xlane.xlu0 %105
  %v107 = vmul.f32 %v66, %v66
  %v108 = vmul.f32 %v73, %v73
  %v109 = vmul.f32 %v80, %v80
  %v110 = vmul.f32 %v87, %v87
  %v115 = vsel %vm96, %v109, %v107
  %v116 = vsel %vm96, %v110, %v108
  %v119 = vsel %vm101, %v115, 0.0
  %v120 = vsel %vm101, %v116, 0.0
  %v121 = vadd.f32 %v119, %v120
  %122 = vadd.xlane.f32.xlu0 %v121
  %v123 = vpop.xlane.xlu0 %122
  %v124 = vmax.f32 %v106, 1e-24
  %v125 = vrsqrt.pop %v124
  %v127 = vrot.slane %v125, 1
  %v130 = vmul.f32 %v30, %v125
  %v131 = vmul.f32 %v37, %v125
  %v132 = vmul.f32 %v44, %v127
  %v133 = vmul.f32 %v51, %v127
  %v134 = vmax.f32 %v123, 1e-24
  %v135 = vrsqrt.pop %v134
  %v137 = vrot.slane %v135, 1
  %v140 = vmul.f32 %v66, %v135
  %v141 = vmul.f32 %v73, %v135
  %v142 = vmul.f32 %v80, %v137
  %v143 = vmul.f32 %v87, %v137
  %v144 = vsub.f32 %v130, %v140
  %v145 = vsub.f32 %v131, %v141
  %v146 = vsub.f32 %v132, %v142
  %v147 = vsub.f32 %v133, %v143
  %v148 = vmul.f32 %v144, %v144
  %v149 = vmul.f32 %v145, %v145
  %v150 = vmul.f32 %v146, %v146
  %v151 = vmul.f32 %v147, %v147
  %v156 = vrot.slane %v150, 7
  %v157 = vsel %vm96, %v156, %v148
  %v158 = vrot.slane %v151, 7
  %v159 = vsel %vm96, %v158, %v149
  %v162 = vsel %vm101, %v157, 0.0
  %v163 = vsel %vm101, %v159, 0.0
  %v164 = vadd.f32 %v162, %v163
  %165 = vadd.xlane.f32.xlu0 %v164
  %v166 = vpop.xlane.xlu0 %165
  %v167 = vrot.slane %v166, 4
  %v168 = vadd.f32 %v166, %v167
  %v169 = vrot.slane %v168, 2
  %v170 = vadd.f32 %v168, %v169
  %v171 = vrot.slane %v170, 1
  %v172 = vadd.f32 %v170, %v171
  %s173 = vtos %v172
  %v174 = vstv %s173
  %175 = vst [vmem:[%s2] sm:$0x1] %v174
  // Predicated region
  $region10: #{base_distill_loss.1} parent=0 // pred_check
    _
  $region11: #{base_distill_loss.1} parent=0 // pred_check_branch
    %177 = sbr.rel (0) target = $region13
  $region12: #{base_distill_loss.1} parent=0 // pred_region
    _
  $region13: #{base_distill_loss.1} parent=0 // pred_fallthru
    _
  // Predicated region
  $region14: #{base_distill_loss.1} parent=0 // pred_check
    _
  $region15: #{base_distill_loss.1} parent=0 // pred_check_branch
    %179 = sbr.rel (0) target = $region17
  $region16: #{base_distill_loss.1} parent=0 // pred_region
    _
  $region17: #{base_distill_loss.1} parent=0 // pred_fallthru
    _

</llo_original>
